<compile_context>
chip_gen: v7x
topology: tpu7x:2x2x1
jax: 0.10.0
libtpu: 0.0.40
codegen_flags: <defaults>
</compile_context>

<pallas_src>
import numpy as np

import jax
import jax.numpy as jnp
from jax.experimental import pallas as pl
from jax.experimental.pallas import tpu as pltpu


# ----------------------------- kernel body ------------------------------------

def _make_kernel(num_layers, nh, m_half):
    """One grid step: MLP over TR*C*C rows + selection-matrix reduction."""

    def kernel(x_ref, sel_ref, *rest):
        o_ref = rest[-1]
        params = rest[:-1]  # w0, b0, w1, b1, ...

        h = x_ref[...]  # (TR*C*C, D) -- input dtype goes straight to the MXU
        for l in range(num_layers):
            w = params[2 * l][...]          # (in, out)
            b = params[2 * l + 1][...]      # (1, out)
            h = jnp.dot(h, w, preferred_element_type=jnp.float32) + b
            if l != num_layers - 1:
                h = jnp.maximum(h, 0.0)
        # h: (TR*C*C, nh) f32

        # One matmul does both: rows [0, TR*C) select diag entries,
        # rows [TR*C, 2*TR*C) are the (1/(C-1))-weighted off-diagonal means.
        red = jnp.dot(sel_ref[...], h, preferred_element_type=jnp.float32)  # (2*TR*C, nh)

        o_ref[:, :nh] = red[:m_half, :].astype(o_ref.dtype)
        o_ref[:, nh:] = red[m_half:, :].astype(o_ref.dtype)

    return kernel


# --------------------------- wrapper / tiling ----------------------------------

def _choose_rounds_per_block(R, C, target_m=256, sel_budget_bytes=4 << 20):
    """Pick TR (rounds per grid block): M = TR*C*C >= target_m, TR*C sublane-aligned,
    selection matrix within a small VMEM budget."""
    CC = C * C
    best = None
    tr = 1
    while tr <= 1024:
        sel_bytes = (2 * tr * C) * (tr * CC) * 4
        if sel_bytes > sel_budget_bytes:
            break
        if (tr * C) % 8 == 0:
            best = tr
            if tr * CC >= target_m:
                break
        tr += 1
    if best is None:
        best = R  # fall back to a single full-array block (no alignment constraint)
    return max(1, min(best, R))


def _make_selection(tr, C):
    """(2*tr*C, tr*C*C) block-diagonal selection matrix (precomputed on host)."""
    CC = C * C
    sel = np.zeros((2 * tr * C, tr * CC), dtype=np.float32)
    off_w = 1.0 / (C - 1)
    for t in range(tr):
        for c in range(C):
            sel[t * C + c, t * CC + c * C + c] = 1.0          # diag pick
            for k in range(C):
                if k != c:
                    sel[tr * C + t * C + c, t * CC + c * C + k] = off_w  # off-diag mean
    return sel


def same_diff_encoder_forward(fv, weights, biases):
    """fv: (R, C, C, ninput); weights[l]: (in_l, out_l); biases[l]: (out_l,)."""
    R, C, C2, D = fv.shape
    assert C == C2
    assert C >= 2, "off-diagonal mean requires nclasses >= 2"
    nh = weights[-1].shape[1]
    num_layers = len(weights)
    CC = C * C

    tr = _choose_rounds_per_block(R, C)
    r_pad = pl.cdiv(R, tr) * tr
    grid = r_pad // tr

    # Glue reshapes / padding in plain JAX (padded rounds are dropped at the end).
    x = fv.reshape(R, CC, D)
    if r_pad != R:
        x = jnp.pad(x, ((0, r_pad - R), (0, 0), (0, 0)))
    x = x.reshape(r_pad * CC, D)

    sel = jnp.asarray(_make_selection(tr, C))

    in_specs = [
        pl.BlockSpec((tr * CC, D), lambda r: (r, 0)),      # per-block input rows
        pl.BlockSpec(sel.shape, lambda r: (0, 0)),         # constant selection matrix
    ]
    args = [x, sel]
    for w, b in zip(weights, biases):
        in_specs.append(pl.BlockSpec(w.shape, lambda r: (0, 0)))
        in_specs.append(pl.BlockSpec((1, b.shape[-1]), lambda r: (0, 0)))
        args.append(w)
        args.append(b.reshape(1, -1))

    out = pl.pallas_call(
        _make_kernel(num_layers, nh, tr * C),
        out_shape=jax.ShapeDtypeStruct((r_pad * C, 2 * nh), fv.dtype),
        grid=(grid,),
        in_specs=in_specs,
        out_specs=pl.BlockSpec((tr * C, 2 * nh), lambda r: (r, 0)),
        compiler_params=pltpu.CompilerParams(dimension_semantics=("parallel",)),
    )(*args)

    return out.reshape(r_pad, C, 2 * nh)[:R]


# ----------------------- parameter init (deterministic) -----------------------

def init_mlp_params(key, ninput, nh, noutput, nlayers):
    """PyTorch nn.Linear-style init: U(-1/sqrt(fan_in), 1/sqrt(fan_in)). Weights stored (in, out)."""
    if nlayers == 1:
        dims = [(ninput, noutput)]
    else:
        dims = [(ninput, nh)] + [(nh, nh)] * (nlayers - 2) + [(nh, noutput)]
    weights, biases = [], []
    for (fin, fout) in dims:
        key, kw, kb = jax.random.split(key, 3)
        bound = 1.0 / np.sqrt(fin)
        weights.append(jax.random.uniform(kw, (fin, fout), jnp.float32, -bound, bound))
        biases.append(jax.random.uniform(kb, (fout,), jnp.float32, -bound, bound))
    return weights, biases


# ----------------------------- pure-JAX reference -----------------------------

def reference_forward(fv, weights, biases):
    R, C, _, D = fv.shape
    h = fv.reshape(R * C * C, D)
    for i, (w, b) in enumerate(zip(weights, biases)):
        h = h @ w + b
        if i != len(weights) - 1:
            h = jnp.maximum(h, 0.0)
    nh = h.shape[-1]
    h = h.reshape(R, C * C, nh)
    ind_diag = list(range(0, C * C, C + 1))
    ind_off = sorted(set(range(C * C)) - set(ind_diag))
    h_diag = h[:, jnp.array(ind_diag), :]
    h_off = h[:, jnp.array(ind_off), :].reshape(R, C, C - 1, nh).mean(axis=2)
    return jnp.concatenate([h_diag, h_off], axis=2)


# ----------------------------------- main -------------------------------------

if __name__ == "__main__":
    nclasses, ninput, nh, nlayers = 4, 32, 32, 2

    key = jax.random.PRNGKey(0)
    key, kparam = jax.random.split(key)
    weights, biases = init_mlp_params(kparam, ninput, nh, nh, nlayers)

    # Two cases: tiny (single block) and larger (multi-block grid + round padding).
    for rounds in (2, 40):
        key, kfv = jax.random.split(key)
        fv = jax.random.normal(kfv, (rounds, nclasses, nclasses, ninput), jnp.float32)

        out = jax.block_until_ready(same_diff_encoder_forward(fv, weights, biases))
        ref = jax.block_until_ready(reference_forward(fv, weights, biases))

        assert out.shape == (rounds, nclasses, 2 * nh)
        np.testing.assert_allclose(np.asarray(out), np.asarray(ref), rtol=1e-4, atol=1e-4)

    print("KERNEL_OK")
</pallas_src>

<mosaic_0001>
module attributes {stable_mosaic.version = 11 : i64} {
  func.func @kernel(%arg0: i32, %arg1: memref<32x32xf32, #tpu.memory_space<vmem>>, %arg2: memref<16x32xf32, #tpu.memory_space<vmem>>, %arg3: memref<32x32xf32, #tpu.memory_space<vmem>>, %arg4: memref<1x32xf32, #tpu.memory_space<vmem>>, %arg5: memref<32x32xf32, #tpu.memory_space<vmem>>, %arg6: memref<1x32xf32, #tpu.memory_space<vmem>>, %arg7: memref<8x64xf32, #tpu.memory_space<vmem>>) attributes {dimension_semantics = [#tpu.dimension_semantics<parallel>], iteration_bounds = array<i64: 1>, scalar_prefetch = 0 : i64, scratch_operands = 0 : i64, tpu.core_type = #tpu.core_type<tc>, window_params = [{transform_indices = @transform_0, window_bounds = array<i64: 32, 32>}, {pipeline_mode = #tpu.pipeline_mode<synchronous>, transform_indices = @transform_1, window_bounds = array<i64: 16, 32>}, {pipeline_mode = #tpu.pipeline_mode<synchronous>, transform_indices = @transform_2, window_bounds = array<i64: 32, 32>}, {pipeline_mode = #tpu.pipeline_mode<synchronous>, transform_indices = @transform_3, window_bounds = array<i64: 1, 32>}, {pipeline_mode = #tpu.pipeline_mode<synchronous>, transform_indices = @transform_4, window_bounds = array<i64: 32, 32>}, {pipeline_mode = #tpu.pipeline_mode<synchronous>, transform_indices = @transform_5, window_bounds = array<i64: 1, 32>}, {transform_indices = @transform_6, window_bounds = array<i64: 8, 64>}]} {
    %c0 = arith.constant 0 : index
    %c0_0 = arith.constant 0 : index
    %0 = vector.load %arg1[%c0, %c0_0] : memref<32x32xf32, #tpu.memory_space<vmem>>, vector<32x32xf32>
    %c0_1 = arith.constant 0 : index
    %c0_2 = arith.constant 0 : index
    %1 = vector.load %arg3[%c0_1, %c0_2] : memref<32x32xf32, #tpu.memory_space<vmem>>, vector<32x32xf32>
    %c0_3 = arith.constant 0 : index
    %c0_4 = arith.constant 0 : index
    %2 = vector.load %arg4[%c0_3, %c0_4] : memref<1x32xf32, #tpu.memory_space<vmem>>, vector<1x32xf32>
    %cst = arith.constant dense<0.000000e+00> : vector<32x32xf32>
    %3 = tpu.matmul %0, %1, %cst {dimension_numbers = #tpu.dot_dimension_numbers<[1], [0], [0], [1], [0, 0, 1, 1], [], []>} : vector<32x32xf32>, vector<32x32xf32>, vector<32x32xf32> -> vector<32x32xf32>
    %4 = vector.broadcast %2 : vector<1x32xf32> to vector<32x32xf32>
    %5 = arith.addf %3, %4 : vector<32x32xf32>
    %cst_5 = arith.constant 0.000000e+00 : f32
    %6 = vector.broadcast %cst_5 : f32 to vector<32x32xf32>
    %7 = arith.maximumf %5, %6 : vector<32x32xf32>
    %c0_6 = arith.constant 0 : index
    %c0_7 = arith.constant 0 : index
    %8 = vector.load %arg5[%c0_6, %c0_7] : memref<32x32xf32, #tpu.memory_space<vmem>>, vector<32x32xf32>
    %c0_8 = arith.constant 0 : index
    %c0_9 = arith.constant 0 : index
    %9 = vector.load %arg6[%c0_8, %c0_9] : memref<1x32xf32, #tpu.memory_space<vmem>>, vector<1x32xf32>
    %cst_10 = arith.constant dense<0.000000e+00> : vector<32x32xf32>
    %10 = tpu.matmul %7, %8, %cst_10 {dimension_numbers = #tpu.dot_dimension_numbers<[1], [0], [0], [1], [0, 0, 1, 1], [], []>} : vector<32x32xf32>, vector<32x32xf32>, vector<32x32xf32> -> vector<32x32xf32>
    %11 = vector.broadcast %9 : vector<1x32xf32> to vector<32x32xf32>
    %12 = arith.addf %10, %11 : vector<32x32xf32>
    %c0_11 = arith.constant 0 : index
    %c0_12 = arith.constant 0 : index
    %13 = vector.load %arg2[%c0_11, %c0_12] : memref<16x32xf32, #tpu.memory_space<vmem>>, vector<16x32xf32>
    %cst_13 = arith.constant dense<0.000000e+00> : vector<16x32xf32>
    %14 = tpu.matmul %13, %12, %cst_13 {dimension_numbers = #tpu.dot_dimension_numbers<[1], [0], [0], [1], [0, 0, 1, 1], [], []>} : vector<16x32xf32>, vector<32x32xf32>, vector<16x32xf32> -> vector<16x32xf32>
    %15 = vector.extract_strided_slice %14 {offsets = [0, 0], sizes = [8, 32], strides = [1, 1]} : vector<16x32xf32> to vector<8x32xf32>
    %c0_14 = arith.constant 0 : index
    %c0_15 = arith.constant 0 : index
    %16 = vector.load %arg7[%c0_14, %c0_15] : memref<8x64xf32, #tpu.memory_space<vmem>>, vector<8x32xf32>
    tpu.vector_store %arg7[%c0_14, %c0_15], %15 {strides = array<i32>} : memref<8x64xf32, #tpu.memory_space<vmem>>, vector<8x32xf32>,
    %17 = vector.extract_strided_slice %14 {offsets = [8, 0], sizes = [8, 32], strides = [1, 1]} : vector<16x32xf32> to vector<8x32xf32>
    %c0_16 = arith.constant 0 : index
    %c32 = arith.constant 32 : index
    %18 = vector.load %arg7[%c0_16, %c32] : memref<8x64xf32, #tpu.memory_space<vmem>>, vector<8x32xf32>
    tpu.vector_store %arg7[%c0_16, %c32], %17 {strides = array<i32>} : memref<8x64xf32, #tpu.memory_space<vmem>>, vector<8x32xf32>,
    return
  }
  func.func @transform_0(%arg0: i32) -> (i32, i32) {
    %c0_i32 = arith.constant 0 : i32
    %c0_i32_0 = arith.constant 0 : i32
    return %arg0, %c0_i32 : i32, i32
  }
  func.func @transform_1(%arg0: i32) -> (i32, i32) {
    %c0_i32 = arith.constant 0 : i32
    %c0_i32_0 = arith.constant 0 : i32
    %c0_i32_1 = arith.constant 0 : i32
    return %c0_i32, %c0_i32_0 : i32, i32
  }
  func.func @transform_2(%arg0: i32) -> (i32, i32) {
    %c0_i32 = arith.constant 0 : i32
    %c0_i32_0 = arith.constant 0 : i32
    %c0_i32_1 = arith.constant 0 : i32
    return %c0_i32, %c0_i32_0 : i32, i32
  }
  func.func @transform_3(%arg0: i32) -> (i32, i32) {
    %c0_i32 = arith.constant 0 : i32
    %c0_i32_0 = arith.constant 0 : i32
    %c0_i32_1 = arith.constant 0 : i32
    return %c0_i32, %c0_i32_0 : i32, i32
  }
  func.func @transform_4(%arg0: i32) -> (i32, i32) {
    %c0_i32 = arith.constant 0 : i32
    %c0_i32_0 = arith.constant 0 : i32
    %c0_i32_1 = arith.constant 0 : i32
    return %c0_i32, %c0_i32_0 : i32, i32
  }
  func.func @transform_5(%arg0: i32) -> (i32, i32) {
    %c0_i32 = arith.constant 0 : i32
    %c0_i32_0 = arith.constant 0 : i32
    %c0_i32_1 = arith.constant 0 : i32
    return %c0_i32, %c0_i32_0 : i32, i32
  }
  func.func @transform_6(%arg0: i32) -> (i32, i32) {
    %c0_i32 = arith.constant 0 : i32
    %c0_i32_0 = arith.constant 0 : i32
    return %arg0, %c0_i32 : i32, i32
  }
}

</mosaic_0001>

<llo_original>
// kernel: tpu_custom_call.1
$region0: #{tpu_custom_call.1}
  #allocation0 [shape = 'u32[]', space=smem, size = 0x4, offset = 0x4, fixed_abs, tag = 'smem constant byte address 0x4 - core index']
  #allocation1 [shape = 'u32[144,128]{1,0:T(1,128)}', space=vmem, size = 0x12000, scoped, tag = 'internal scratch']
  %s0 = inlined_call_operand.hbm [shape: f32[32,32], index: 0, kind: input, shape index: {}]
  %s1 = inlined_call_operand.hbm [shape: f32[16,32], index: 1, kind: input, shape index: {}]
  %s2 = inlined_call_operand.hbm [shape: f32[32,32], index: 2, kind: input, shape index: {}]
  %s3 = inlined_call_operand.vmem [shape: f32[1,32], index: 3, kind: input, shape index: {}]
  %s4 = inlined_call_operand.hbm [shape: f32[32,32], index: 4, kind: input, shape index: {}]
  %s5 = inlined_call_operand.vmem [shape: f32[1,32], index: 5, kind: input, shape index: {}]
  %s6 = inlined_call_operand.hbm [shape: f32[8,64], index: 6, kind: output, shape index: {}]
  %s7 = sld [smem:[#allocation0]]
  $region50: #{tpu_custom_call.1} parent=0
    _
  %s9 = ssub.s32 1, %s7
  %s10 = scalar_select 0, %s9, %s7
  $region1: #{tpu_custom_call.1} parent=0
    #allocation2 [shape = 'u8[16384]{0}', space=vmem, size = 0x4000, scoped, tag = 'input window, operand 0, single buffered']
    #allocation3 [shape = 's32[1]{0}', space=sflag, size = 0x4, scoped, tag = 'scoped memory for tpu_custom_call.1']
    #allocation4 [shape = 's32[1]{0}', space=sflag, size = 0x4, scoped, tag = 'scoped memory for tpu_custom_call.1']
    #allocation5 [shape = 'u8[8192]{0}', space=vmem, size = 0x2000, scoped, tag = 'input window, operand 1, single buffered']
    #allocation6 [shape = 's32[1]{0}', space=sflag, size = 0x4, scoped, tag = 'scoped memory for tpu_custom_call.1']
    #allocation7 [shape = 'u8[16384]{0}', space=vmem, size = 0x4000, scoped, tag = 'input window, operand 2, single buffered']
    #allocation8 [shape = 'u8[16384]{0}', space=vmem, size = 0x4000, scoped, tag = 'input window, operand 4, single buffered']
    #allocation9 [shape = 's32[1]{0}', space=sflag, size = 0x4, scoped, tag = 'scoped memory for tpu_custom_call.1']
    #allocation10 [shape = 'u8[4096]{0}', space=vmem, size = 0x1000, scoped, tag = 'output window, operand 0, single buffered']
    %11 = vsyncpa [#allocation3], 0
    %12 = vsyncpa [#allocation6], 0
    %13 = vsyncpa [#allocation9], 0
    %14 = vsyncpa [#allocation4], 0
    // Predicated region
    $region2: #{tpu_custom_call.1} parent=1 // pred_check
      _
    $region3: #{tpu_custom_call.1} parent=1 // pred_check_branch
      %16 = sbr.rel (0) target = $region5
    $region4: #{tpu_custom_call.1} parent=1 // pred_region
      %s18 = ssub.s32 512, 512
      %19 = vsyncadd [#allocation3], %s18
      %s20 = sshll.u32 [#allocation2], 4
      %s21 = int_to_ptr.vmem [resolvable:$true] %s20
      %26 = dma.hbm_to_vmem [thread:$0]  %s0, 512, %s21, [#allocation3], 128, 128, 8
    $region5: #{tpu_custom_call.1} parent=1 // pred_fallthru
      _
    // Predicated region
    $region6: #{tpu_custom_call.1} parent=1 // pred_check
      _
    $region7: #{tpu_custom_call.1} parent=1 // pred_check_branch
      %28 = sbr.rel (0) target = $region9
    $region8: #{tpu_custom_call.1} parent=1 // pred_region
      %s30 = ssub.s32 256, 256
      %31 = vsyncadd [#allocation6], %s30
      %s32 = sshll.u32 [#allocation5], 4
      %s33 = int_to_ptr.vmem [resolvable:$true] %s32
      %38 = dma.hbm_to_vmem [thread:$0]  %s1, 256, %s33, [#allocation6], 128, 128, 8
    $region9: #{tpu_custom_call.1} parent=1 // pred_fallthru
      _
    // Predicated region
    $region10: #{tpu_custom_call.1} parent=1 // pred_check
      _
    $region11: #{tpu_custom_call.1} parent=1 // pred_check_branch
      %40 = sbr.rel (0) target = $region13
    $region12: #{tpu_custom_call.1} parent=1 // pred_region
      %s42 = ssub.s32 512, 512
      %43 = vsyncadd [#allocation6], %s42
      %s44 = sshll.u32 [#allocation7], 4
      %s45 = int_to_ptr.vmem [resolvable:$true] %s44
      %50 = dma.hbm_to_vmem [thread:$0]  %s2, 512, %s45, [#allocation6], 128, 128, 8
    $region13: #{tpu_custom_call.1} parent=1 // pred_fallthru
      _
    // Predicated region
    $region14: #{tpu_custom_call.1} parent=1 // pred_check
      _
    $region15: #{tpu_custom_call.1} parent=1 // pred_check_branch
      %52 = sbr.rel (0) target = $region17
    $region16: #{tpu_custom_call.1} parent=1 // pred_region
      _
    $region17: #{tpu_custom_call.1} parent=1 // pred_fallthru
      _
    // Predicated region
    $region18: #{tpu_custom_call.1} parent=1 // pred_check
      _
    $region19: #{tpu_custom_call.1} parent=1 // pred_check_branch
      %54 = sbr.rel (0) target = $region21
    $region20: #{tpu_custom_call.1} parent=1 // pred_region
      %s56 = ssub.s32 512, 512
      %57 = vsyncadd [#allocation9], %s56
      %s58 = sshll.u32 [#allocation8], 4
      %s59 = int_to_ptr.vmem [resolvable:$true] %s58
      %64 = dma.hbm_to_vmem [thread:$0]  %s4, 512, %s59, [#allocation9], 128, 128, 8
    $region21: #{tpu_custom_call.1} parent=1 // pred_fallthru
      _
    // Predicated region
    $region22: #{tpu_custom_call.1} parent=1 // pred_check
      _
    $region23: #{tpu_custom_call.1} parent=1 // pred_check_branch
      %66 = sbr.rel (0) target = $region25
    $region24: #{tpu_custom_call.1} parent=1 // pred_region
      _
    $region25: #{tpu_custom_call.1} parent=1 // pred_fallthru
      _
    // Predicated region
    $region26: #{tpu_custom_call.1} parent=1 // pred_check
      _
    $region27: #{tpu_custom_call.1} parent=1 // pred_check_branch
      %68 = sbr.rel (0) target = $region29
    $region28: #{tpu_custom_call.1} parent=1 // pred_region
      %69 = dma.done [#allocation3], 512
    $region29: #{tpu_custom_call.1} parent=1 // pred_fallthru
      _
    // Predicated region
    $region30: #{tpu_custom_call.1} parent=1 // pred_check
      _
    $region31: #{tpu_custom_call.1} parent=1 // pred_check_branch
      %71 = sbr.rel (0) target = $region33
    $region32: #{tpu_custom_call.1} parent=1 // pred_region
      %72 = dma.done [#allocation6], 256
    $region33: #{tpu_custom_call.1} parent=1 // pred_fallthru
      _
    // Predicated region
    $region34: #{tpu_custom_call.1} parent=1 // pred_check
      _
    $region35: #{tpu_custom_call.1} parent=1 // pred_check_branch
      %74 = sbr.rel (0) target = $region37
    $region36: #{tpu_custom_call.1} parent=1 // pred_region
      %75 = dma.done [#allocation6], 512
    $region37: #{tpu_custom_call.1} parent=1 // pred_fallthru
      _
    // Predicated region
    $region38: #{tpu_custom_call.1} parent=1 // pred_check
      _
    $region39: #{tpu_custom_call.1} parent=1 // pred_check_branch
      %77 = sbr.rel (0) target = $region41
    $region40: #{tpu_custom_call.1} parent=1 // pred_region
      %78 = dma.done [#allocation9], 512
    $region41: #{tpu_custom_call.1} parent=1 // pred_fallthru
      _
    %v79 = vld [vmem:[#allocation2] sm:$0xff]
    %v80 = vld [vmem:[#allocation2 + $0x8] sm:$0xff]
    %v81 = vld [vmem:[#allocation2 + $0x10] sm:$0xff]
    %v82 = vld [vmem:[#allocation2 + $0x18] sm:$0xff]
    %v83 = vld [vmem:[#allocation7] sm:$0xff]
    %v84 = vld [vmem:[#allocation7 + $0x8] sm:$0xff]
    %v85 = vld [vmem:[#allocation7 + $0x10] sm:$0xff]
    %v86 = vld [vmem:[#allocation7 + $0x18] sm:$0xff]
    %v87 = vld [vmem:[%s3] sm:$0x1]
    %v89 = vlaneseq
    %v90 = vshrl.u32 %v89, 7
    %v91 = vsub.s32 0, %v90
    %v92 = vrot.slane %v87, %v91
    %vm94 = vcmask 261120
    %v96 = vsel %vm94, %v79, 0
    %v99 = vsel %vm94, %v80, 0
    %v102 = vsel %vm94, %v81, 0
    %v105 = vsel %vm94, %v82, 0
    %107 = vmatprep.subr.mxu0 0.0
    %108 = vmatpush1.msra.mxu0 %v83
    %109 = vmatprep.subr.mxu0 0.0
    %110 = vmatpush1.msra.mxu0 %v84
    %111 = vmatprep.subr.mxu0 0.0
    %112 = vmatpush1.msra.mxu0 %v85
    %113 = vmatprep.subr.mxu0 0.0
    %114 = vmatpush1.msra.mxu0 %v86
    %115 = vmatprep.subr.mxu0 0.0
    %116 = vmatpush1.msra.mxu0 0.0
    %117 = vmatprep.subr.mxu0 0.0
    %118 = vmatpush1.msra.mxu0 0.0
    %119 = vmatprep.subr.mxu0 0.0
    %120 = vmatpush1.msra.mxu0 0.0
    %121 = vmatprep.subr.mxu0 0.0
    %122 = vmatpush1.msra.mxu0 0.0
    %123 = vmatprep.subr.mxu0 0.0
    %124 = vmatpush1.msra.mxu0 0.0
    %125 = vmatprep.subr.mxu0 0.0
    %126 = vmatpush1.msra.mxu0 0.0
    %127 = vmatprep.subr.mxu0 0.0
    %128 = vmatpush1.msra.mxu0 0.0
    %129 = vmatprep.subr.mxu0 0.0
    %130 = vmatpush1.msra.mxu0 0.0
    %131 = vmatprep.subr.mxu0 0.0
    %132 = vmatpush1.msra.mxu0 0.0
    %133 = vmatprep.subr.mxu0 0.0
    %134 = vmatpush1.msra.mxu0 0.0
    %135 = vmatprep.subr.mxu0 0.0
    %136 = vmatpush1.msra.mxu0 0.0
    %137 = vmatprep.subr.mxu0 0.0
    %138 = vmatpush1.msra.mxu0 0.0
    %139 = vmatprep.subr.mxu0 0.0
    %140 = vmatpush1.msra.mxu0 0.0
    %141 = vmatprep.subr.mxu0 0.0
    %142 = vmatpush1.msra.mxu0 0.0
    %143 = vmatprep.subr.mxu0 0.0
    %144 = vmatpush1.msra.mxu0 0.0
    %145 = vmatprep.subr.mxu0 0.0
    %146 = vmatpush1.msra.mxu0 0.0
    %147 = vmatprep.subr.mxu0 0.0
    %148 = vmatpush1.msra.mxu0 0.0
    %149 = vmatprep.subr.mxu0 0.0
    %150 = vmatpush1.msra.mxu0 0.0
    %151 = vmatprep.subr.mxu0 0.0
    %152 = vmatpush1.msra.mxu0 0.0
    %153 = vmatprep.subr.mxu0 0.0
    %154 = vmatpush1.msra.mxu0 0.0
    %155 = vmatprep.subr.mxu0 0.0
    %156 = vmatpush1.msra.mxu0 0.0
    %157 = vmatprep.subr.mxu0 0.0
    %158 = vmatpush1.msra.mxu0 0.0
    %159 = vmatprep.subr.mxu0 0.0
    %160 = vmatpush1.msra.mxu0 0.0
    %161 = vmatprep.subr.mxu0 0.0
    %162 = vmatpush1.msra.mxu0 0.0
    %163 = vmatprep.subr.mxu0 0.0
    %164 = vmatpush1.msra.mxu0 0.0
    %165 = vmatprep.subr.mxu0 0.0
    %166 = vmatpush1.msra.mxu0 0.0
    %167 = vmatprep.subr.mxu0 0.0
    %168 = vmatpush1.msra.mxu0 0.0
    %169 = vmatprep.subr.mxu0 0.0
    %170 = vmatpush1.msra.mxu0 0.0
    %171 = vmatprep.mubr.f32.mxu0 0.0
    %172 = vmatmul.mubr.f32.gmra.mrb[0].mxu0 %v96
    %v173 = vpop.f32.mrb[0].mxu0
    %v174 = vadd.f32 %v92, %v173
    %v175 = vpop.f32.mrb[0].mxu0
    %176 = vmatprep.mubr.f32.mxu0 0.0
    %177 = vmatmul.mubr.f32.gmra.mrb[0].mxu0 %v99
    %v178 = vpop.f32.mrb[0].mxu0
    %v179 = vadd.f32 %v92, %v178
    %v180 = vpop.f32.mrb[0].mxu0
    %181 = vmatprep.mubr.f32.mxu0 0.0
    %182 = vmatmul.mubr.f32.gmra.mrb[0].mxu0 %v102
    %v183 = vpop.f32.mrb[0].mxu0
    %v184 = vadd.f32 %v92, %v183
    %v185 = vpop.f32.mrb[0].mxu0
    %186 = vmatprep.mubr.f32.mxu0 0.0
    %187 = vmatmul.mubr.f32.gmra.mrb[0].mxu0 %v105
    %v188 = vpop.f32.mrb[0].mxu0
    %v189 = vadd.f32 %v92, %v188
    %v190 = vpop.f32.mrb[0].mxu0
    %191 = vdwg.mxu0
    %v192 = vmax.f32 %v174, 0.0
    %v193 = vmax.f32 %v179, 0.0
    %v194 = vmax.f32 %v184, 0.0
    %v195 = vmax.f32 %v189, 0.0
    %v196 = vld [vmem:[#allocation8] sm:$0xff]
    %v197 = vld [vmem:[#allocation8 + $0x8] sm:$0xff]
    %v198 = vld [vmem:[#allocation8 + $0x10] sm:$0xff]
    %v199 = vld [vmem:[#allocation8 + $0x18] sm:$0xff]
    %v200 = vld [vmem:[%s5] sm:$0x1]
    %v202 = vlaneseq
    %v203 = vshrl.u32 %v202, 7
    %v204 = vsub.s32 0, %v203
    %v205 = vrot.slane %v200, %v204
    %v208 = vsel %vm94, %v192, 0
    %v211 = vsel %vm94, %v193, 0
    %v214 = vsel %vm94, %v194, 0
    %v217 = vsel %vm94, %v195, 0
    %219 = vmatprep.subr.mxu0 0.0
    %220 = vmatpush1.msra.mxu0 %v196
    %221 = vmatprep.subr.mxu0 0.0
    %222 = vmatpush1.msra.mxu0 %v197
    %223 = vmatprep.subr.mxu0 0.0
    %224 = vmatpush1.msra.mxu0 %v198
    %225 = vmatprep.subr.mxu0 0.0
    %226 = vmatpush1.msra.mxu0 %v199
    %227 = vmatprep.subr.mxu0 0.0
    %228 = vmatpush1.msra.mxu0 0.0
    %229 = vmatprep.subr.mxu0 0.0
    %230 = vmatpush1.msra.mxu0 0.0
    %231 = vmatprep.subr.mxu0 0.0
    %232 = vmatpush1.msra.mxu0 0.0
    %233 = vmatprep.subr.mxu0 0.0
    %234 = vmatpush1.msra.mxu0 0.0
    %235 = vmatprep.subr.mxu0 0.0
    %236 = vmatpush1.msra.mxu0 0.0
    %237 = vmatprep.subr.mxu0 0.0
    %238 = vmatpush1.msra.mxu0 0.0
    %239 = vmatprep.subr.mxu0 0.0
    %240 = vmatpush1.msra.mxu0 0.0
    %241 = vmatprep.subr.mxu0 0.0
    %242 = vmatpush1.msra.mxu0 0.0
    %243 = vmatprep.subr.mxu0 0.0
    %244 = vmatpush1.msra.mxu0 0.0
    %245 = vmatprep.subr.mxu0 0.0
    %246 = vmatpush1.msra.mxu0 0.0
    %247 = vmatprep.subr.mxu0 0.0
    %248 = vmatpush1.msra.mxu0 0.0
    %249 = vmatprep.subr.mxu0 0.0
    %250 = vmatpush1.msra.mxu0 0.0
    %251 = vmatprep.subr.mxu0 0.0
    %252 = vmatpush1.msra.mxu0 0.0
    %253 = vmatprep.subr.mxu0 0.0
    %254 = vmatpush1.msra.mxu0 0.0
    %255 = vmatprep.subr.mxu0 0.0
    %256 = vmatpush1.msra.mxu0 0.0
    %257 = vmatprep.subr.mxu0 0.0
    %258 = vmatpush1.msra.mxu0 0.0
    %259 = vmatprep.subr.mxu0 0.0
    %260 = vmatpush1.msra.mxu0 0.0
    %261 = vmatprep.subr.mxu0 0.0
    %262 = vmatpush1.msra.mxu0 0.0
    %263 = vmatprep.subr.mxu0 0.0
    %264 = vmatpush1.msra.mxu0 0.0
    %265 = vmatprep.subr.mxu0 0.0
    %266 = vmatpush1.msra.mxu0 0.0
    %267 = vmatprep.subr.mxu0 0.0
    %268 = vmatpush1.msra.mxu0 0.0
    %269 = vmatprep.subr.mxu0 0.0
    %270 = vmatpush1.msra.mxu0 0.0
    %271 = vmatprep.subr.mxu0 0.0
    %272 = vmatpush1.msra.mxu0 0.0
    %273 = vmatprep.subr.mxu0 0.0
    %274 = vmatpush1.msra.mxu0 0.0
    %275 = vmatprep.subr.mxu0 0.0
    %276 = vmatpush1.msra.mxu0 0.0
    %277 = vmatprep.subr.mxu0 0.0
    %278 = vmatpush1.msra.mxu0 0.0
    %279 = vmatprep.subr.mxu0 0.0
    %280 = vmatpush1.msra.mxu0 0.0
    %281 = vmatprep.subr.mxu0 0.0
    %282 = vmatpush1.msra.mxu0 0.0
    %283 = vmatprep.mubr.f32.mxu0 0.0
    %284 = vmatmul.mubr.f32.gmra.mrb[0].mxu0 %v208
    %v285 = vpop.f32.mrb[0].mxu0
    %v286 = vadd.f32 %v205, %v285
    %v287 = vpop.f32.mrb[0].mxu0
    %288 = vmatprep.mubr.f32.mxu0 0.0
    %289 = vmatmul.mubr.f32.gmra.mrb[0].mxu0 %v211
    %v290 = vpop.f32.mrb[0].mxu0
    %v291 = vadd.f32 %v205, %v290
    %v292 = vpop.f32.mrb[0].mxu0
    %293 = vmatprep.mubr.f32.mxu0 0.0
    %294 = vmatmul.mubr.f32.gmra.mrb[0].mxu0 %v214
    %v295 = vpop.f32.mrb[0].mxu0
    %v296 = vadd.f32 %v205, %v295
    %v297 = vpop.f32.mrb[0].mxu0
    %298 = vmatprep.mubr.f32.mxu0 0.0
    %299 = vmatmul.mubr.f32.gmra.mrb[0].mxu0 %v217
    %v300 = vpop.f32.mrb[0].mxu0
    %v301 = vadd.f32 %v205, %v300
    %v302 = vpop.f32.mrb[0].mxu0
    %303 = vdwg.mxu0
    %v304 = vld [vmem:[#allocation5] sm:$0xff]
    %v305 = vld [vmem:[#allocation5 + $0x8] sm:$0xff]
    %v307 = vsel %vm94, %v304, 0
    %v310 = vsel %vm94, %v305, 0
    %312 = vmatprep.subr.mxu0 0.0
    %313 = vmatpush1.msra.mxu0 %v286
    %314 = vmatprep.subr.mxu0 0.0
    %315 = vmatpush1.msra.mxu0 %v291
    %316 = vmatprep.subr.mxu0 0.0
    %317 = vmatpush1.msra.mxu0 %v296
    %318 = vmatprep.subr.mxu0 0.0
    %319 = vmatpush1.msra.mxu0 %v301
    %320 = vmatprep.subr.mxu0 0.0
    %321 = vmatpush1.msra.mxu0 0.0
    %322 = vmatprep.subr.mxu0 0.0
    %323 = vmatpush1.msra.mxu0 0.0
    %324 = vmatprep.subr.mxu0 0.0
    %325 = vmatpush1.msra.mxu0 0.0
    %326 = vmatprep.subr.mxu0 0.0
    %327 = vmatpush1.msra.mxu0 0.0
    %328 = vmatprep.subr.mxu0 0.0
    %329 = vmatpush1.msra.mxu0 0.0
    %330 = vmatprep.subr.mxu0 0.0
    %331 = vmatpush1.msra.mxu0 0.0
    %332 = vmatprep.subr.mxu0 0.0
    %333 = vmatpush1.msra.mxu0 0.0
    %334 = vmatprep.subr.mxu0 0.0
    %335 = vmatpush1.msra.mxu0 0.0
    %336 = vmatprep.subr.mxu0 0.0
    %337 = vmatpush1.msra.mxu0 0.0
    %338 = vmatprep.subr.mxu0 0.0
    %339 = vmatpush1.msra.mxu0 0.0
    %340 = vmatprep.subr.mxu0 0.0
    %341 = vmatpush1.msra.mxu0 0.0
    %342 = vmatprep.subr.mxu0 0.0
    %343 = vmatpush1.msra.mxu0 0.0
    %344 = vmatprep.subr.mxu0 0.0
    %345 = vmatpush1.msra.mxu0 0.0
    %346 = vmatprep.subr.mxu0 0.0
    %347 = vmatpush1.msra.mxu0 0.0
    %348 = vmatprep.subr.mxu0 0.0
    %349 = vmatpush1.msra.mxu0 0.0
    %350 = vmatprep.subr.mxu0 0.0
    %351 = vmatpush1.msra.mxu0 0.0
    %352 = vmatprep.subr.mxu0 0.0
    %353 = vmatpush1.msra.mxu0 0.0
    %354 = vmatprep.subr.mxu0 0.0
    %355 = vmatpush1.msra.mxu0 0.0
    %356 = vmatprep.subr.mxu0 0.0
    %357 = vmatpush1.msra.mxu0 0.0
    %358 = vmatprep.subr.mxu0 0.0
    %359 = vmatpush1.msra.mxu0 0.0
    %360 = vmatprep.subr.mxu0 0.0
    %361 = vmatpush1.msra.mxu0 0.0
    %362 = vmatprep.subr.mxu0 0.0
    %363 = vmatpush1.msra.mxu0 0.0
    %364 = vmatprep.subr.mxu0 0.0
    %365 = vmatpush1.msra.mxu0 0.0
    %366 = vmatprep.subr.mxu0 0.0
    %367 = vmatpush1.msra.mxu0 0.0
    %368 = vmatprep.subr.mxu0 0.0
    %369 = vmatpush1.msra.mxu0 0.0
    %370 = vmatprep.subr.mxu0 0.0
    %371 = vmatpush1.msra.mxu0 0.0
    %372 = vmatprep.subr.mxu0 0.0
    %373 = vmatpush1.msra.mxu0 0.0
    %374 = vmatprep.subr.mxu0 0.0
    %375 = vmatpush1.msra.mxu0 0.0
    %376 = vmatprep.mubr.f32.mxu0 0.0
    %377 = vmatmul.mubr.f32.gmra.mrb[0].mxu0 %v307
    %v378 = vpop.f32.mrb[0].mxu0
    %v379 = vadd.f32 0.0, %v378
    %v380 = vpop.f32.mrb[0].mxu0
    %381 = vmatprep.mubr.f32.mxu0 0.0
    %382 = vmatmul.mubr.f32.gmra.mrb[0].mxu0 %v310
    %v383 = vpop.f32.mrb[0].mxu0
    %v384 = vadd.f32 0.0, %v383
    %v385 = vpop.f32.mrb[0].mxu0
    %386 = vdwg.mxu0
    %387 = vst.msk [vmem:[#allocation10] sm:$0xff] %vm94, %v379
    %389 = vrot.lane.b32.xlu0 %v384, 32
    %v390 = vpop.permute.xlu0 %389
    %vm392 = vcmask 523520
    %393 = vst.msk [vmem:[#allocation10] sm:$0xff] %vm392, %v390
    // Predicated region
    $region42: #{tpu_custom_call.1} parent=1 // pred_check
      _
    $region43: #{tpu_custom_call.1} parent=1 // pred_check_branch
      %395 = sbr.rel (0) target = $region45
    $region44: #{tpu_custom_call.1} parent=1 // pred_region
      %s397 = ssub.s32 128, 128
      %398 = vsyncadd [#allocation4], %s397
      %s400 = sshll.u32 [#allocation10], 4
      %s401 = int_to_ptr.vmem [resolvable:$true] %s400
      %403 = dma.vmem_to_hbm [thread:$0]  %s401, 128, %s6, [#allocation4]
    $region45: #{tpu_custom_call.1} parent=1 // pred_fallthru
      _
    // Predicated region
    $region46: #{tpu_custom_call.1} parent=1 // pred_check
      _
    $region47: #{tpu_custom_call.1} parent=1 // pred_check_branch
      %405 = sbr.rel (0) target = $region49
    $region48: #{tpu_custom_call.1} parent=1 // pred_region
      %406 = dma.done [#allocation4], 128
    $region49: #{tpu_custom_call.1} parent=1 // pred_fallthru
      _
    %407 = vsyncpa [#allocation3], 1
    %408 = vsyncpa [#allocation6], 1
    %409 = vsyncpa [#allocation9], 1
    %410 = vsyncpa [#allocation4], 1

</llo_original>
